<compile_context>
chip_gen: v7x
topology: tpu7x:2x2x1
jax: 0.10.0
libtpu: 0.0.40
codegen_flags: <defaults>
</compile_context>

<pallas_src>
import functools

import jax
import jax.numpy as jnp
from jax import lax
from jax.experimental import pallas as pl
from jax.experimental.pallas import tpu as pltpu


def _round_up(x, m):
    return ((x + m - 1) // m) * m


def _kappa_loss_kernel(y_pred_ref, y_true_ref, w_ref, out_ref, conf_ref):
    step = pl.program_id(0)

    @pl.when(step == 0)
    def _init():
        conf_ref[...] = jnp.zeros_like(conf_ref)

    # ---- accumulation: conf[i, j] += sum_n 1[label_n == i] * p[n, j] --------
    y_pred = y_pred_ref[...]                                   # (TB, C) f32
    labels = y_true_ref[...]                                   # (TB, 1) i32
    tb, c = y_pred.shape

    class_ids = lax.broadcasted_iota(jnp.int32, (tb, c), 1)
    onehot = (class_ids == labels).astype(jnp.float32)         # (TB, C)
    # Transposed-LHS matmul (contract over the batch/sublane dim) -> (C, C).
    conf_ref[...] += lax.dot_general(
        onehot, y_pred,
        dimension_numbers=(((0,), (0,)), ((), ())),
        preferred_element_type=jnp.float32)

    # ---- scalar epilogue on the last grid step ------------------------------
    @pl.when(step == pl.num_programs(0) - 1)
    def _finalize():
        conf = conf_ref[...]                                   # (C, C)
        w = w_ref[...]                                         # (C, C)
        ones_c1 = jnp.ones((c, 1), jnp.float32)

        row_sums = jnp.sum(conf, axis=1, keepdims=True)        # (C, 1)
        # col_sums in the SAME (C, 1) orientation (contract conf over dim 0)
        # so the penalty pairs row_sums[i] with col_sums[i] directly.
        col_sums = lax.dot_general(
            conf, ones_c1,
            dimension_numbers=(((0,), (0,)), ((), ())),
            preferred_element_type=jnp.float32)                # (C, 1)

        total = jnp.sum(row_sums)
        inv_total = 1.0 / total                                # hoisted once

        numerator = jnp.sum(w * conf)
        # denominator = sum_ij W[i,j] * r[i] * c[j] / total == r^T (W c) / total
        # (chance matrix never materialized).
        w_col = jnp.dot(w, col_sums, preferred_element_type=jnp.float32)
        denominator = jnp.sum(row_sums * w_col) * inv_total
        kappa = 1.0 - numerator / denominator

        penalty = inv_total * jnp.sum(
            row_sums * (jnp.log(row_sums + 1e-8) - jnp.log(col_sums + 1e-8)))

        # TODO(synk): the PyTorch module raises ValueError on numerator<0 /
        # denominator<=0 / |kappa|>1; data-dependent host-side raises have no
        # in-kernel equivalent, so the checks are omitted.
        out_ref[0, 0] = -jnp.log((kappa + 1.0) * 0.5) + penalty


def make_weight_matrix(num_classes=5, weight_power=0.5):
    if weight_power > 2 or weight_power < 0:
        raise ValueError("Unknown kappa weighting type.")
    if weight_power == 0:
        return (jnp.ones((num_classes, num_classes), jnp.float32)
                - jnp.eye(num_classes, dtype=jnp.float32))
    i = jnp.arange(num_classes, dtype=jnp.float32)[:, None]
    j = jnp.arange(num_classes, dtype=jnp.float32)[None, :]
    return (jnp.abs(i - j) ** weight_power) / ((num_classes - 1) ** weight_power)


@functools.partial(jax.jit, static_argnames=("block_b",))
def weighted_kappa_loss(y_pred, y_true, weight_matrix, *, block_b=1024):
    y_pred = y_pred.astype(jnp.float32)
    y_true2d = y_true.reshape(-1, 1).astype(jnp.int32)
    b, c = y_pred.shape

    # Tile: multiple of 8 sublanes, capped at block_b.  The C=5 lane dim is
    # padded to 128 per vreg, so even 1024-row tiles stay tiny in VMEM.
    tb = _round_up(min(block_b, _round_up(b, 8)), 8)
    b_pad = _round_up(b, tb)
    if b_pad != b:
        # Zero-probability padding rows add nothing to the confusion matrix
        # regardless of the (zero) padded label, so semantics are preserved.
        y_pred = jnp.pad(y_pred, ((0, b_pad - b), (0, 0)))
        y_true2d = jnp.pad(y_true2d, ((0, b_pad - b), (0, 0)))

    cost = pl.CostEstimate(
        flops=2 * b_pad * c * c + 8 * c * c,
        transcendentals=2 * c + 2,
        bytes_accessed=b_pad * c * 4 + b_pad * 4 + c * c * 4 + 4,
    )

    out = pl.pallas_call(
        _kappa_loss_kernel,
        out_shape=jax.ShapeDtypeStruct((1, 1), jnp.float32),
        grid_spec=pltpu.PrefetchScalarGridSpec(
            num_scalar_prefetch=0,
            grid=(b_pad // tb,),
            in_specs=[
                pl.BlockSpec((tb, c), lambda i: (i, 0)),   # y_pred tile
                pl.BlockSpec((tb, 1), lambda i: (i, 0)),   # labels tile
                pl.BlockSpec((c, c), lambda i: (0, 0)),    # W, resident
            ],
            out_specs=pl.BlockSpec(memory_space=pltpu.MemorySpace.SMEM),
            scratch_shapes=[pltpu.VMEM((c, c), jnp.float32)],
        ),
        compiler_params=pltpu.CompilerParams(
            dimension_semantics=("arbitrary",)),
        cost_estimate=cost,
    )(y_pred, y_true2d, weight_matrix.astype(jnp.float32))
    return out[0, 0]


def reference_loss(y_pred, y_true, w, num_classes):
    """Pure-JAX reference replicating the PyTorch forward."""
    onehot = jax.nn.one_hot(y_true, num_classes, dtype=jnp.float32)
    conf = onehot.T @ y_pred.astype(jnp.float32)
    row = conf.sum(axis=1)
    col = conf.sum(axis=0)
    tot = conf.sum()
    chance = row[:, None] * col[None, :] / tot
    num = jnp.sum(w * conf)
    den = jnp.sum(w * chance)
    kappa = 1.0 - num / den
    penalty = (1.0 / tot) * jnp.sum(row * (jnp.log(row + 1e-8) - jnp.log(col + 1e-8)))
    return -jnp.log((kappa + 1.0) / 2.0) + penalty


if __name__ == "__main__":
    num_classes = 5
    key = jax.random.PRNGKey(0)
    k1, k2, k3, k4 = jax.random.split(key, 4)
    w = make_weight_matrix(num_classes=num_classes, weight_power=0.5)

    # Case 1: tiny batch (single grid step, the module's default use).
    logits_a = jax.random.normal(k1, (8, num_classes), dtype=jnp.float32)
    y_pred_a = jax.nn.softmax(logits_a, axis=-1)
    y_true_a = jax.random.randint(k2, (8,), 0, num_classes, dtype=jnp.int32)
    loss_a = jax.block_until_ready(weighted_kappa_loss(y_pred_a, y_true_a, w))
    ref_a = reference_loss(y_pred_a, y_true_a, w, num_classes)
    assert jnp.allclose(loss_a, ref_a, rtol=1e-4, atol=1e-5), (loss_a, ref_a)

    # Case 2: batch not a multiple of the tile (exercises grid > 1 + padding).
    logits_b = jax.random.normal(k3, (40, num_classes), dtype=jnp.float32)
    y_pred_b = jax.nn.softmax(logits_b, axis=-1)
    y_true_b = jax.random.randint(k4, (40,), 0, num_classes, dtype=jnp.int32)
    loss_b = jax.block_until_ready(
        weighted_kappa_loss(y_pred_b, y_true_b, w, block_b=16))
    ref_b = reference_loss(y_pred_b, y_true_b, w, num_classes)
    assert jnp.allclose(loss_b, ref_b, rtol=1e-4, atol=1e-5), (loss_b, ref_b)

    print("KERNEL_OK")
</pallas_src>

<mosaic_0001>
module attributes {stable_mosaic.version = 11 : i64} {
  func.func @_kappa_loss_kernel(%arg0: i32, %arg1: memref<8x5xf32, #tpu.memory_space<vmem>>, %arg2: memref<8x1xi32, #tpu.memory_space<vmem>>, %arg3: memref<5x5xf32, #tpu.memory_space<vmem>>, %arg4: memref<1x1xf32, #tpu.memory_space<smem>>, %arg5: memref<5x5xf32, #tpu.memory_space<vmem>>) attributes {dimension_semantics = [#tpu.dimension_semantics<arbitrary>], iteration_bounds = array<i64: 1>, scalar_prefetch = 0 : i64, scratch_operands = 1 : i64, tpu.core_type = #tpu.core_type<tc>, window_params = [{transform_indices = @transform_0, window_bounds = array<i64: 8, 5>}, {transform_indices = @transform_1, window_bounds = array<i64: 8, 1>}, {pipeline_mode = #tpu.pipeline_mode<synchronous>, transform_indices = @transform_2, window_bounds = array<i64: 5, 5>}, {transform_indices = @transform_3, window_bounds = array<i64: 1, 1>}]} {
    %c0_i32 = arith.constant 0 : i32
    %0 = arith.cmpi eq, %arg0, %c0_i32 : i32
    %1 = arith.extui %0 : i1 to i32
    %c0_i32_0 = arith.constant 0 : i32
    %2 = arith.cmpi ne, %1, %c0_i32_0 : i32
    scf.if %2 {
      %cst_10 = arith.constant 0.000000e+00 : f32
      %17 = vector.broadcast %cst_10 : f32 to vector<5x5xf32>
      %c0_11 = arith.constant 0 : index
      %c0_12 = arith.constant 0 : index
      %18 = vector.load %arg5[%c0_11, %c0_12] : memref<5x5xf32, #tpu.memory_space<vmem>>, vector<5x5xf32>
      tpu.vector_store %arg5[%c0_11, %c0_12], %17 {strides = array<i32>} : memref<5x5xf32, #tpu.memory_space<vmem>>, vector<5x5xf32>,
    } else {
    }
    %c0 = arith.constant 0 : index
    %c0_1 = arith.constant 0 : index
    %3 = vector.load %arg1[%c0, %c0_1] : memref<8x5xf32, #tpu.memory_space<vmem>>, vector<8x5xf32>
    %c0_2 = arith.constant 0 : index
    %c0_3 = arith.constant 0 : index
    %4 = vector.load %arg2[%c0_2, %c0_3] : memref<8x1xi32, #tpu.memory_space<vmem>>, vector<8x1xi32>
    %5 = tpu.iota {dimensions = array<i32: 1>} : vector<8x5xi32>
    %6 = vector.broadcast %4 : vector<8x1xi32> to vector<8x5xi32>
    %7 = arith.cmpi eq, %5, %6 : vector<8x5xi32>
    %8 = arith.extui %7 : vector<8x5xi1> to vector<8x5xi32>
    %9 = arith.sitofp %8 : vector<8x5xi32> to vector<8x5xf32>
    %c0_4 = arith.constant 0 : index
    %c0_5 = arith.constant 0 : index
    %10 = vector.load %arg5[%c0_4, %c0_5] : memref<5x5xf32, #tpu.memory_space<vmem>>, vector<5x5xf32>
    %cst = arith.constant dense<0.000000e+00> : vector<5x5xf32>
    %11 = tpu.matmul %9, %3, %cst {dimension_numbers = #tpu.dot_dimension_numbers<[0], [0], [1], [1], [0, 1, 1, 1], [], []>} : vector<8x5xf32>, vector<8x5xf32>, vector<5x5xf32> -> vector<5x5xf32>
    %12 = arith.addf %10, %11 : vector<5x5xf32>
    %c0_6 = arith.constant 0 : index
    %c0_7 = arith.constant 0 : index
    %13 = vector.load %arg5[%c0_6, %c0_7] : memref<5x5xf32, #tpu.memory_space<vmem>>, vector<5x5xf32>
    tpu.vector_store %arg5[%c0_6, %c0_7], %12 {strides = array<i32>} : memref<5x5xf32, #tpu.memory_space<vmem>>, vector<5x5xf32>,
    %c0_i32_8 = arith.constant 0 : i32
    %14 = arith.cmpi eq, %arg0, %c0_i32_8 : i32
    %15 = arith.extui %14 : i1 to i32
    %c0_i32_9 = arith.constant 0 : i32
    %16 = arith.cmpi ne, %15, %c0_i32_9 : i32
    scf.if %16 {
      %c0_10 = arith.constant 0 : index
      %c0_11 = arith.constant 0 : index
      %17 = vector.load %arg5[%c0_10, %c0_11] : memref<5x5xf32, #tpu.memory_space<vmem>>, vector<5x5xf32>
      %c0_12 = arith.constant 0 : index
      %c0_13 = arith.constant 0 : index
      %18 = vector.load %arg3[%c0_12, %c0_13] : memref<5x5xf32, #tpu.memory_space<vmem>>, vector<5x5xf32>
      %cst_14 = arith.constant 1.000000e+00 : f32
      %19 = vector.broadcast %cst_14 : f32 to vector<5x1xf32>
      %cst_15 = arith.constant dense<0.000000e+00> : vector<5xf32>
      %20 = vector.multi_reduction <add>, %17, %cst_15 [1] : vector<5x5xf32> to vector<5xf32>
      %21 = vector.shape_cast %20 : vector<5xf32> to vector<5x1xf32>
      %cst_16 = arith.constant dense<0.000000e+00> : vector<5x1xf32>
      %22 = tpu.matmul %17, %19, %cst_16 {dimension_numbers = #tpu.dot_dimension_numbers<[0], [0], [1], [1], [0, 1, 1, 1], [], []>} : vector<5x5xf32>, vector<5x1xf32>, vector<5x1xf32> -> vector<5x1xf32>
      %23 = vector.shape_cast %21 : vector<5x1xf32> to vector<1x5x1xf32>
      %cst_17 = arith.constant dense<0.000000e+00> : vector<1xf32>
      %24 = vector.multi_reduction <add>, %23, %cst_17 [1, 2] : vector<1x5x1xf32> to vector<1xf32>
      %25 = vector.shape_cast %24 : vector<1xf32> to vector<1x1x1xf32>
      %26 = vector.extract %25[0, 0, 0] : f32 from vector<1x1x1xf32>
      %cst_18 = arith.constant 1.000000e+00 : f32
      %27 = arith.divf %cst_18, %26 : f32
      %28 = arith.mulf %18, %17 : vector<5x5xf32>
      %29 = vector.shape_cast %28 : vector<5x5xf32> to vector<1x5x5xf32>
      %cst_19 = arith.constant dense<0.000000e+00> : vector<1xf32>
      %30 = vector.multi_reduction <add>, %29, %cst_19 [1, 2] : vector<1x5x5xf32> to vector<1xf32>
      %31 = vector.shape_cast %30 : vector<1xf32> to vector<1x1x1xf32>
      %32 = vector.extract %31[0, 0, 0] : f32 from vector<1x1x1xf32>
      %cst_20 = arith.constant dense<0.000000e+00> : vector<5x1xf32>
      %33 = tpu.matmul %18, %22, %cst_20 {dimension_numbers = #tpu.dot_dimension_numbers<[1], [0], [0], [1], [0, 0, 1, 1], [], []>} : vector<5x5xf32>, vector<5x1xf32>, vector<5x1xf32> -> vector<5x1xf32>
      %34 = arith.mulf %21, %33 : vector<5x1xf32>
      %35 = vector.shape_cast %34 : vector<5x1xf32> to vector<1x5x1xf32>
      %cst_21 = arith.constant dense<0.000000e+00> : vector<1xf32>
      %36 = vector.multi_reduction <add>, %35, %cst_21 [1, 2] : vector<1x5x1xf32> to vector<1xf32>
      %37 = vector.shape_cast %36 : vector<1xf32> to vector<1x1x1xf32>
      %38 = vector.extract %37[0, 0, 0] : f32 from vector<1x1x1xf32>
      %39 = arith.mulf %38, %27 : f32
      %40 = arith.divf %32, %39 : f32
      %cst_22 = arith.constant 1.000000e+00 : f32
      %41 = arith.subf %cst_22, %40 : f32
      %cst_23 = arith.constant 9.99999993E-9 : f32
      %42 = vector.broadcast %cst_23 : f32 to vector<5x1xf32>
      %43 = arith.addf %21, %42 : vector<5x1xf32>
      %44 = math.log %43 : vector<5x1xf32>
      %cst_24 = arith.constant 9.99999993E-9 : f32
      %45 = vector.broadcast %cst_24 : f32 to vector<5x1xf32>
      %46 = arith.addf %22, %45 : vector<5x1xf32>
      %47 = math.log %46 : vector<5x1xf32>
      %48 = arith.subf %44, %47 : vector<5x1xf32>
      %49 = arith.mulf %21, %48 : vector<5x1xf32>
      %50 = vector.shape_cast %49 : vector<5x1xf32> to vector<1x5x1xf32>
      %cst_25 = arith.constant dense<0.000000e+00> : vector<1xf32>
      %51 = vector.multi_reduction <add>, %50, %cst_25 [1, 2] : vector<1x5x1xf32> to vector<1xf32>
      %52 = vector.shape_cast %51 : vector<1xf32> to vector<1x1x1xf32>
      %53 = vector.extract %52[0, 0, 0] : f32 from vector<1x1x1xf32>
      %54 = arith.mulf %27, %53 : f32
      %cst_26 = arith.constant 1.000000e+00 : f32
      %55 = arith.addf %41, %cst_26 : f32
      %cst_27 = arith.constant 5.000000e-01 : f32
      %56 = arith.mulf %55, %cst_27 : f32
      %57 = math.log %56 : f32
      %cst_28 = arith.constant 0.000000e+00 : f32
      %58 = arith.subf %cst_28, %57 : f32
      %59 = arith.addf %58, %54 : f32
      %c0_29 = arith.constant 0 : index
      %c0_30 = arith.constant 0 : index
      %60 = memref.load %arg4[%c0_29, %c0_30] : memref<1x1xf32, #tpu.memory_space<smem>>
      memref.store %59, %arg4[%c0_29, %c0_30] : memref<1x1xf32, #tpu.memory_space<smem>>
    } else {
    }
    return
  }
  func.func @transform_0(%arg0: i32) -> (i32, i32) {
    %c0_i32 = arith.constant 0 : i32
    %c0_i32_0 = arith.constant 0 : i32
    return %arg0, %c0_i32 : i32, i32
  }
  func.func @transform_1(%arg0: i32) -> (i32, i32) {
    %c0_i32 = arith.constant 0 : i32
    %c0_i32_0 = arith.constant 0 : i32
    return %arg0, %c0_i32 : i32, i32
  }
  func.func @transform_2(%arg0: i32) -> (i32, i32) {
    %c0_i32 = arith.constant 0 : i32
    %c0_i32_0 = arith.constant 0 : i32
    %c0_i32_1 = arith.constant 0 : i32
    return %c0_i32, %c0_i32_0 : i32, i32
  }
  func.func @transform_3(%arg0: i32) -> (i32, i32) {
    %c0_i32 = arith.constant 0 : i32
    %c0_i32_0 = arith.constant 0 : i32
    %c0_i32_1 = arith.constant 0 : i32
    return %c0_i32, %c0_i32_0 : i32, i32
  }
}

</mosaic_0001>

<llo_original>
// kernel: weighted_kappa_loss.1
$region0: #{weighted_kappa_loss.1}
  #allocation0 [shape = 'u32[]', space=smem, size = 0x4, offset = 0x4, fixed_abs, tag = 'smem constant byte address 0x4 - core index']
  #allocation1 [shape = 'u32[144,128]{1,0:T(1,128)}', space=vmem, size = 0x12000, scoped, tag = 'internal scratch']
  #allocation2 [shape = 'f32[5,5]{1,0:T(8,128)}', space=vmem, size = 0x1000, scoped, tag = 'scratch operand']
  %s0 = inlined_call_operand.vmem [shape: f32[8,5], index: 0, kind: input, shape index: {}]
  %s1 = inlined_call_operand.vmem [shape: s32[8,1], index: 1, kind: input, shape index: {}]
  %s2 = inlined_call_operand.vmem [shape: f32[5,5], index: 2, kind: input, shape index: {}]
  %s3 = inlined_call_operand.hbm [shape: f32[1,1], index: 3, kind: output, shape index: {}]
  %s4 = sld [smem:[#allocation0]]
  $region30: #{weighted_kappa_loss.1} parent=0
    _
  %s6 = ssub.s32 1, %s4
  %s7 = scalar_select 0, %s6, %s4
  $region1: #{weighted_kappa_loss.1} parent=0
    #allocation3 [shape = 'u8[512]{0}', space=smem, size = 0x200, scoped, tag = 'output window, operand 0, single buffered']
    #allocation4 [shape = 's32[1]{0}', space=sflag, size = 0x4, scoped, tag = 'scoped memory for weighted_kappa_loss.1']
    %8 = vsyncpa [#allocation4], 0
    // Predicated region
    $region2: #{weighted_kappa_loss.1} parent=1 // pred_check
      _
    $region3: #{weighted_kappa_loss.1} parent=1 // pred_check_branch
      %10 = sbr.rel (0) target = $region5
    $region4: #{weighted_kappa_loss.1} parent=1 // pred_region
      _
    $region5: #{weighted_kappa_loss.1} parent=1 // pred_fallthru
      _
    // Predicated region
    $region6: #{weighted_kappa_loss.1} parent=1 // pred_check
      _
    $region7: #{weighted_kappa_loss.1} parent=1 // pred_check_branch
      %12 = sbr.rel (0) target = $region9
    $region8: #{weighted_kappa_loss.1} parent=1 // pred_region
      _
    $region9: #{weighted_kappa_loss.1} parent=1 // pred_fallthru
      _
    // Predicated region
    $region10: #{weighted_kappa_loss.1} parent=1 // pred_check
      _
    $region11: #{weighted_kappa_loss.1} parent=1 // pred_check_branch
      %14 = sbr.rel (0) target = $region13
    $region12: #{weighted_kappa_loss.1} parent=1 // pred_region
      _
    $region13: #{weighted_kappa_loss.1} parent=1 // pred_fallthru
      _
    %p15 = scmp.eq.s32.totalorder 0, 0
    // Predicated region
    $region14: #{weighted_kappa_loss.1} parent=1 // pred_check
      %p16 = pneg %p15
    $region15: #{weighted_kappa_loss.1} parent=1 // pred_check_branch
      %18 = sbr.rel (%p16) target = $region17
    $region16: #{weighted_kappa_loss.1} parent=1 // pred_region
      %vm19 = vcmask 36864
      %20 = vst.msk [vmem:[#allocation2] sm:$0x1f] %vm19, 0.0
    $region17: #{weighted_kappa_loss.1} parent=1 // pred_fallthru
      _
    %v21 = vld [vmem:[%s0] sm:$0xff]
    %v22 = vld [vmem:[%s1] sm:$0xff]
    %v23 = vlaneseq
    %v24 = vand.u32 %v23, 127
    %25 = vset.pattern.permute.xlu0 0
    %26 = vperm.xlu0 %25, %v22
    %v27 = vpop.permute.xlu0 %26
    %vm28 = vcmp.eq.s32.totalorder %v24, %v27
    %v29 = vsel %vm28, 1, 0
    %v30 = vcvt.s32.f32 %v29
    %v31 = vld [vmem:[#allocation2] sm:$0x1f]
    %32 = vxpose.xlu0.b32.start [1/16] %v30, 128
    %33 = vxpose.xlu0.b32.cont [2/16] 0.0, 128
    %34 = vxpose.xlu0.b32.cont [3/16] 0.0, 128
    %35 = vxpose.xlu0.b32.cont [4/16] 0.0, 128
    %36 = vxpose.xlu0.b32.cont [5/16] 0.0, 128
    %37 = vxpose.xlu0.b32.cont [6/16] 0.0, 128
    %38 = vxpose.xlu0.b32.cont [7/16] 0.0, 128
    %39 = vxpose.xlu0.b32.cont [8/16] 0.0, 128
    %40 = vxpose.xlu0.b32.cont [9/16] 0.0, 128
    %41 = vxpose.xlu0.b32.cont [10/16] 0.0, 128
    %42 = vxpose.xlu0.b32.cont [11/16] 0.0, 128
    %43 = vxpose.xlu0.b32.cont [12/16] 0.0, 128
    %44 = vxpose.xlu0.b32.cont [13/16] 0.0, 128
    %45 = vxpose.xlu0.b32.cont [14/16] 0.0, 128
    %46 = vxpose.xlu0.b32.cont [15/16] 0.0, 128
    %47 = vxpose.xlu0.b32.end [16/16] 0.0, 128
    %v48 = vpop.trf.xlu0
    %v49 = vpop.trf.xlu0
    %v50 = vpop.trf.xlu0
    %v51 = vpop.trf.xlu0
    %v52 = vpop.trf.xlu0
    %v53 = vpop.trf.xlu0
    %v54 = vpop.trf.xlu0
    %v55 = vpop.trf.xlu0
    %v56 = vpop.trf.xlu0
    %v57 = vpop.trf.xlu0
    %v58 = vpop.trf.xlu0
    %v59 = vpop.trf.xlu0
    %v60 = vpop.trf.xlu0
    %v61 = vpop.trf.xlu0
    %v62 = vpop.trf.xlu0
    %v63 = vpop.trf.xlu0
    %vm64 = vcmask 64512
    %v66 = vsel %vm64, %v48, 0
    %68 = vmatprep.subr.mxu0 0.0
    %69 = vmatpush1.msra.mxu0 %v21
    %70 = vmatprep.subr.mxu0 0.0
    %71 = vmatpush1.msra.mxu0 0.0
    %72 = vmatprep.subr.mxu0 0.0
    %73 = vmatpush1.msra.mxu0 0.0
    %74 = vmatprep.subr.mxu0 0.0
    %75 = vmatpush1.msra.mxu0 0.0
    %76 = vmatprep.subr.mxu0 0.0
    %77 = vmatpush1.msra.mxu0 0.0
    %78 = vmatprep.subr.mxu0 0.0
    %79 = vmatpush1.msra.mxu0 0.0
    %80 = vmatprep.subr.mxu0 0.0
    %81 = vmatpush1.msra.mxu0 0.0
    %82 = vmatprep.subr.mxu0 0.0
    %83 = vmatpush1.msra.mxu0 0.0
    %84 = vmatprep.subr.mxu0 0.0
    %85 = vmatpush1.msra.mxu0 0.0
    %86 = vmatprep.subr.mxu0 0.0
    %87 = vmatpush1.msra.mxu0 0.0
    %88 = vmatprep.subr.mxu0 0.0
    %89 = vmatpush1.msra.mxu0 0.0
    %90 = vmatprep.subr.mxu0 0.0
    %91 = vmatpush1.msra.mxu0 0.0
    %92 = vmatprep.subr.mxu0 0.0
    %93 = vmatpush1.msra.mxu0 0.0
    %94 = vmatprep.subr.mxu0 0.0
    %95 = vmatpush1.msra.mxu0 0.0
    %96 = vmatprep.subr.mxu0 0.0
    %97 = vmatpush1.msra.mxu0 0.0
    %98 = vmatprep.subr.mxu0 0.0
    %99 = vmatpush1.msra.mxu0 0.0
    %100 = vmatprep.subr.mxu0 0.0
    %101 = vmatpush1.msra.mxu0 0.0
    %102 = vmatprep.subr.mxu0 0.0
    %103 = vmatpush1.msra.mxu0 0.0
    %104 = vmatprep.subr.mxu0 0.0
    %105 = vmatpush1.msra.mxu0 0.0
    %106 = vmatprep.subr.mxu0 0.0
    %107 = vmatpush1.msra.mxu0 0.0
    %108 = vmatprep.subr.mxu0 0.0
    %109 = vmatpush1.msra.mxu0 0.0
    %110 = vmatprep.subr.mxu0 0.0
    %111 = vmatpush1.msra.mxu0 0.0
    %112 = vmatprep.subr.mxu0 0.0
    %113 = vmatpush1.msra.mxu0 0.0
    %114 = vmatprep.subr.mxu0 0.0
    %115 = vmatpush1.msra.mxu0 0.0
    %116 = vmatprep.subr.mxu0 0.0
    %117 = vmatpush1.msra.mxu0 0.0
    %118 = vmatprep.subr.mxu0 0.0
    %119 = vmatpush1.msra.mxu0 0.0
    %120 = vmatprep.subr.mxu0 0.0
    %121 = vmatpush1.msra.mxu0 0.0
    %122 = vmatprep.subr.mxu0 0.0
    %123 = vmatpush1.msra.mxu0 0.0
    %124 = vmatprep.subr.mxu0 0.0
    %125 = vmatpush1.msra.mxu0 0.0
    %126 = vmatprep.subr.mxu0 0.0
    %127 = vmatpush1.msra.mxu0 0.0
    %128 = vmatprep.subr.mxu0 0.0
    %129 = vmatpush1.msra.mxu0 0.0
    %130 = vmatprep.subr.mxu0 0.0
    %131 = vmatpush1.msra.mxu0 0.0
    %132 = vmatprep.mubr.f32.mxu0 0.0
    %133 = vmatmul.mubr.f32.gmra.mrb[0].mxu0 %v66
    %v134 = vpop.f32.mrb[0].mxu0
    %v135 = vadd.f32 0.0, %v134
    %v136 = vpop.f32.mrb[0].mxu0
    %137 = vdwg.mxu0
    %v138 = vadd.f32 %v31, %v135
    %vm139 = vcmask 36864
    %140 = vst.msk [vmem:[#allocation2] sm:$0x1f] %vm139, %v138
    // Predicated region
    $region18: #{weighted_kappa_loss.1} parent=1 // pred_check
      %p141 = pneg %p15
    $region19: #{weighted_kappa_loss.1} parent=1 // pred_check_branch
      %143 = sbr.rel (%p141) target = $region21
    $region20: #{weighted_kappa_loss.1} parent=1 // pred_region
      %v144 = vld [vmem:[#allocation2] sm:$0x1f]
      %v145 = vld [vmem:[%s2] sm:$0x1f]
      %v146 = vsel %vm139, %v144, 0.0
      %147 = vadd.xlane.f32.xlu0 %v146
      %v148 = vpop.xlane.xlu0 %147
      %149 = vxpose.xlu0.b32.start [1/16] %v144, 128
      %150 = vxpose.xlu0.b32.cont [2/16] 0.0, 128
      %151 = vxpose.xlu0.b32.cont [3/16] 0.0, 128
      %152 = vxpose.xlu0.b32.cont [4/16] 0.0, 128
      %153 = vxpose.xlu0.b32.cont [5/16] 0.0, 128
      %154 = vxpose.xlu0.b32.cont [6/16] 0.0, 128
      %155 = vxpose.xlu0.b32.cont [7/16] 0.0, 128
      %156 = vxpose.xlu0.b32.cont [8/16] 0.0, 128
      %157 = vxpose.xlu0.b32.cont [9/16] 0.0, 128
      %158 = vxpose.xlu0.b32.cont [10/16] 0.0, 128
      %159 = vxpose.xlu0.b32.cont [11/16] 0.0, 128
      %160 = vxpose.xlu0.b32.cont [12/16] 0.0, 128
      %161 = vxpose.xlu0.b32.cont [13/16] 0.0, 128
      %162 = vxpose.xlu0.b32.cont [14/16] 0.0, 128
      %163 = vxpose.xlu0.b32.cont [15/16] 0.0, 128
      %164 = vxpose.xlu0.b32.end [16/16] 0.0, 128
      %v165 = vpop.trf.xlu0
      %v166 = vpop.trf.xlu0
      %v167 = vpop.trf.xlu0
      %v168 = vpop.trf.xlu0
      %v169 = vpop.trf.xlu0
      %v170 = vpop.trf.xlu0
      %v171 = vpop.trf.xlu0
      %v172 = vpop.trf.xlu0
      %v173 = vpop.trf.xlu0
      %v174 = vpop.trf.xlu0
      %v175 = vpop.trf.xlu0
      %v176 = vpop.trf.xlu0
      %v177 = vpop.trf.xlu0
      %v178 = vpop.trf.xlu0
      %v179 = vpop.trf.xlu0
      %v180 = vpop.trf.xlu0
      %vm181 = vcmask 39936
      %v183 = vsel %vm181, %v165, 0
      %vm185 = vcmask 1044480
      %v187 = vsel %vm185, 1.0, 0
      %189 = vmatprep.subr.mxu0 0.0
      %190 = vmatpush1.msra.mxu0 %v187
      %191 = vmatprep.subr.mxu0 0.0
      %192 = vmatpush1.msra.mxu0 0.0
      %193 = vmatprep.subr.mxu0 0.0
      %194 = vmatpush1.msra.mxu0 0.0
      %195 = vmatprep.subr.mxu0 0.0
      %196 = vmatpush1.msra.mxu0 0.0
      %197 = vmatprep.subr.mxu0 0.0
      %198 = vmatpush1.msra.mxu0 0.0
      %199 = vmatprep.subr.mxu0 0.0
      %200 = vmatpush1.msra.mxu0 0.0
      %201 = vmatprep.subr.mxu0 0.0
      %202 = vmatpush1.msra.mxu0 0.0
      %203 = vmatprep.subr.mxu0 0.0
      %204 = vmatpush1.msra.mxu0 0.0
      %205 = vmatprep.subr.mxu0 0.0
      %206 = vmatpush1.msra.mxu0 0.0
      %207 = vmatprep.subr.mxu0 0.0
      %208 = vmatpush1.msra.mxu0 0.0
      %209 = vmatprep.subr.mxu0 0.0
      %210 = vmatpush1.msra.mxu0 0.0
      %211 = vmatprep.subr.mxu0 0.0
      %212 = vmatpush1.msra.mxu0 0.0
      %213 = vmatprep.subr.mxu0 0.0
      %214 = vmatpush1.msra.mxu0 0.0
      %215 = vmatprep.subr.mxu0 0.0
      %216 = vmatpush1.msra.mxu0 0.0
      %217 = vmatprep.subr.mxu0 0.0
      %218 = vmatpush1.msra.mxu0 0.0
      %219 = vmatprep.subr.mxu0 0.0
      %220 = vmatpush1.msra.mxu0 0.0
      %221 = vmatprep.subr.mxu0 0.0
      %222 = vmatpush1.msra.mxu0 0.0
      %223 = vmatprep.subr.mxu0 0.0
      %224 = vmatpush1.msra.mxu0 0.0
      %225 = vmatprep.subr.mxu0 0.0
      %226 = vmatpush1.msra.mxu0 0.0
      %227 = vmatprep.subr.mxu0 0.0
      %228 = vmatpush1.msra.mxu0 0.0
      %229 = vmatprep.subr.mxu0 0.0
      %230 = vmatpush1.msra.mxu0 0.0
      %231 = vmatprep.subr.mxu0 0.0
      %232 = vmatpush1.msra.mxu0 0.0
      %233 = vmatprep.subr.mxu0 0.0
      %234 = vmatpush1.msra.mxu0 0.0
      %235 = vmatprep.subr.mxu0 0.0
      %236 = vmatpush1.msra.mxu0 0.0
      %237 = vmatprep.subr.mxu0 0.0
      %238 = vmatpush1.msra.mxu0 0.0
      %239 = vmatprep.subr.mxu0 0.0
      %240 = vmatpush1.msra.mxu0 0.0
      %241 = vmatprep.subr.mxu0 0.0
      %242 = vmatpush1.msra.mxu0 0.0
      %243 = vmatprep.subr.mxu0 0.0
      %244 = vmatpush1.msra.mxu0 0.0
      %245 = vmatprep.subr.mxu0 0.0
      %246 = vmatpush1.msra.mxu0 0.0
      %247 = vmatprep.subr.mxu0 0.0
      %248 = vmatpush1.msra.mxu0 0.0
      %249 = vmatprep.subr.mxu0 0.0
      %250 = vmatpush1.msra.mxu0 0.0
      %251 = vmatprep.subr.mxu0 0.0
      %252 = vmatpush1.msra.mxu0 0.0
      %253 = vmatprep.mubr.f32.mxu0 0.0
      %254 = vmatmul.mubr.f32.gmra.mrb[0].mxu0 %v183
      %v255 = vpop.f32.mrb[0].mxu0
      %v256 = vadd.f32 0.0, %v255
      %v257 = vpop.f32.mrb[0].mxu0
      %258 = vdwg.mxu0
      %vm259 = vcmask 4096
      %v260 = vsel %vm259, %v148, 0.0
      %261 = vadd.xlane.f32.xlu0 %v260
      %v262 = vpop.xlane.xlu0 %261
      %v263 = vrot.slane %v262, 4
      %v264 = vadd.f32 %v262, %v263
      %v265 = vrot.slane %v264, 2
      %v266 = vadd.f32 %v264, %v265
      %v267 = vrot.slane %v266, 1
      %v268 = vadd.f32 %v266, %v267
      %s269 = vtos %v268
      %v270 = vstv %s269
      %v271 = vrcp.pop %v270
      %s272 = vtos %v271
      %v273 = vmul.f32 %v145, %v144
      %v274 = vsel %vm139, %v273, 0.0
      %275 = vadd.xlane.f32.xlu0 %v274
      %v276 = vpop.xlane.xlu0 %275
      %v277 = vrot.slane %v276, 4
      %v278 = vadd.f32 %v276, %v277
      %v279 = vrot.slane %v278, 2
      %v280 = vadd.f32 %v278, %v279
      %v281 = vrot.slane %v280, 1
      %v282 = vadd.f32 %v280, %v281
      %s283 = vtos %v282
      %v285 = vsel %vm181, %v145, 0
      %v288 = vsel %vm185, %v256, 0
      %290 = vmatprep.subr.mxu0 0.0
      %291 = vmatpush1.msra.mxu0 %v288
      %292 = vmatprep.subr.mxu0 0.0
      %293 = vmatpush1.msra.mxu0 0.0
      %294 = vmatprep.subr.mxu0 0.0
      %295 = vmatpush1.msra.mxu0 0.0
      %296 = vmatprep.subr.mxu0 0.0
      %297 = vmatpush1.msra.mxu0 0.0
      %298 = vmatprep.subr.mxu0 0.0
      %299 = vmatpush1.msra.mxu0 0.0
      %300 = vmatprep.subr.mxu0 0.0
      %301 = vmatpush1.msra.mxu0 0.0
      %302 = vmatprep.subr.mxu0 0.0
      %303 = vmatpush1.msra.mxu0 0.0
      %304 = vmatprep.subr.mxu0 0.0
      %305 = vmatpush1.msra.mxu0 0.0
      %306 = vmatprep.subr.mxu0 0.0
      %307 = vmatpush1.msra.mxu0 0.0
      %308 = vmatprep.subr.mxu0 0.0
      %309 = vmatpush1.msra.mxu0 0.0
      %310 = vmatprep.subr.mxu0 0.0
      %311 = vmatpush1.msra.mxu0 0.0
      %312 = vmatprep.subr.mxu0 0.0
      %313 = vmatpush1.msra.mxu0 0.0
      %314 = vmatprep.subr.mxu0 0.0
      %315 = vmatpush1.msra.mxu0 0.0
      %316 = vmatprep.subr.mxu0 0.0
      %317 = vmatpush1.msra.mxu0 0.0
      %318 = vmatprep.subr.mxu0 0.0
      %319 = vmatpush1.msra.mxu0 0.0
      %320 = vmatprep.subr.mxu0 0.0
      %321 = vmatpush1.msra.mxu0 0.0
      %322 = vmatprep.subr.mxu0 0.0
      %323 = vmatpush1.msra.mxu0 0.0
      %324 = vmatprep.subr.mxu0 0.0
      %325 = vmatpush1.msra.mxu0 0.0
      %326 = vmatprep.subr.mxu0 0.0
      %327 = vmatpush1.msra.mxu0 0.0
      %328 = vmatprep.subr.mxu0 0.0
      %329 = vmatpush1.msra.mxu0 0.0
      %330 = vmatprep.subr.mxu0 0.0
      %331 = vmatpush1.msra.mxu0 0.0
      %332 = vmatprep.subr.mxu0 0.0
      %333 = vmatpush1.msra.mxu0 0.0
      %334 = vmatprep.subr.mxu0 0.0
      %335 = vmatpush1.msra.mxu0 0.0
      %336 = vmatprep.subr.mxu0 0.0
      %337 = vmatpush1.msra.mxu0 0.0
      %338 = vmatprep.subr.mxu0 0.0
      %339 = vmatpush1.msra.mxu0 0.0
      %340 = vmatprep.subr.mxu0 0.0
      %341 = vmatpush1.msra.mxu0 0.0
      %342 = vmatprep.subr.mxu0 0.0
      %343 = vmatpush1.msra.mxu0 0.0
      %344 = vmatprep.subr.mxu0 0.0
      %345 = vmatpush1.msra.mxu0 0.0
      %346 = vmatprep.subr.mxu0 0.0
      %347 = vmatpush1.msra.mxu0 0.0
      %348 = vmatprep.subr.mxu0 0.0
      %349 = vmatpush1.msra.mxu0 0.0
      %350 = vmatprep.subr.mxu0 0.0
      %351 = vmatpush1.msra.mxu0 0.0
      %352 = vmatprep.subr.mxu0 0.0
      %353 = vmatpush1.msra.mxu0 0.0
      %354 = vmatprep.mubr.f32.mxu0 0.0
      %355 = vmatmul.mubr.f32.gmra.mrb[0].mxu0 %v285
      %v356 = vpop.f32.mrb[0].mxu0
      %v357 = vadd.f32 0.0, %v356
      %v358 = vpop.f32.mrb[0].mxu0
      %359 = vdwg.mxu0
      %v360 = vmul.f32 %v148, %v357
      %v361 = vsel %vm259, %v360, 0.0
      %362 = vadd.xlane.f32.xlu0 %v361
      %v363 = vpop.xlane.xlu0 %362
      %v364 = vrot.slane %v363, 4
      %v365 = vadd.f32 %v363, %v364
      %v366 = vrot.slane %v365, 2
      %v367 = vadd.f32 %v365, %v366
      %v368 = vrot.slane %v367, 1
      %v369 = vadd.f32 %v367, %v368
      %s370 = vtos %v369
      %s371 = smul.f32 %s370, %s272
      %v372 = vstv %s371
      %v373 = vrcp.pop %v372
      %s374 = vtos %v373
      %s375 = smul.f32 %s283, %s374
      %s376 = ssub.f32 1.0, %s375
      %v377 = vadd.f32 %v148, 1e-08
      %v378 = vlog2.pop %v377
      %v379 = vmul.f32 %v378, 0.6931472
      %v380 = vadd.f32 %v256, 1e-08
      %v381 = vlog2.pop %v380
      %v382 = vmul.f32 %v381, 0.6931472
      %v383 = vsub.f32 %v379, %v382
      %v384 = vmul.f32 %v148, %v383
      %v385 = vsel %vm259, %v384, 0.0
      %386 = vadd.xlane.f32.xlu0 %v385
      %v387 = vpop.xlane.xlu0 %386
      %v388 = vrot.slane %v387, 4
      %v389 = vadd.f32 %v387, %v388
      %v390 = vrot.slane %v389, 2
      %v391 = vadd.f32 %v389, %v390
      %v392 = vrot.slane %v391, 1
      %v393 = vadd.f32 %v391, %v392
      %s394 = vtos %v393
      %s395 = smul.f32 %s272, %s394
      %s396 = sadd.f32 %s376, 1.0
      %s397 = smul.f32 %s396, 0.5
      %v398 = vstv %s397
      %v399 = vlog2.pop %v398
      %v400 = vmul.f32 %v399, 0.6931472
      %s401 = vtos %v400
      %s402 = ssub.f32 0.0, %s401
      %s403 = sadd.f32 %s402, %s395
      %s404 = scalar_lea.smem [#allocation3], 0
      %405 = sst [smem:[%s404]] %s403
    $region21: #{weighted_kappa_loss.1} parent=1 // pred_fallthru
      _
    // Predicated region
    $region22: #{weighted_kappa_loss.1} parent=1 // pred_check
      _
    $region23: #{weighted_kappa_loss.1} parent=1 // pred_check_branch
      %407 = sbr.rel (0) target = $region25
    $region24: #{weighted_kappa_loss.1} parent=1 // pred_region
      %s409 = ssub.s32 16, 16
      %410 = vsyncadd [#allocation4], %s409
      %413 = dma.smem_to_hbm [#allocation3], 16, %s3, [#allocation4]
    $region25: #{weighted_kappa_loss.1} parent=1 // pred_fallthru
      _
    // Predicated region
    $region26: #{weighted_kappa_loss.1} parent=1 // pred_check
      _
    $region27: #{weighted_kappa_loss.1} parent=1 // pred_check_branch
      %415 = sbr.rel (0) target = $region29
    $region28: #{weighted_kappa_loss.1} parent=1 // pred_region
      %416 = dma.done [#allocation4], 16
    $region29: #{weighted_kappa_loss.1} parent=1 // pred_fallthru
      _
    %417 = sfence
    %418 = vsyncpa [#allocation4], 1

</llo_original>
